<compile_context>
chip_gen: v7x
topology: tpu7x:2x2x1
jax: 0.10.0
libtpu: 0.0.40
codegen_flags: <defaults>
</compile_context>

<pallas_src>
import jax
import jax.numpy as jnp
from jax.experimental import pallas as pl
from jax.experimental.pallas import tpu as pltpu


_LANE = 128
_VMEM_BUDGET = 40 << 20  # double-buffered tile budget; safe vs v7x's 64 MiB VMEM


def _linear_kernel(x_ref, w_ref, b_ref, o_ref):
    # x_ref: (TB, D_in) f32, w_ref: (D_in, TN) bf16, b_ref: (1, TN) f32,
    # o_ref: (TB, TN) f32.  bf16 MXU path, f32 accumulation.
    x = x_ref[...].astype(jnp.bfloat16)
    acc = jnp.dot(x, w_ref[...], preferred_element_type=jnp.float32)
    o_ref[...] = (acc + b_ref[...]).astype(o_ref.dtype)


def _tile_footprint_bytes(tb, tn, d_in, x_itemsize):
    # 2-deep double buffering on every operand + the output tile.
    per_step = (tb * d_in * x_itemsize      # x tile
                + d_in * tn * 2             # bf16 weight tile
                + tn * 4                    # bias tile
                + tb * tn * 4)              # f32 output tile
    return 2 * per_step


def pos_mlp_forward(input_seq, weight_t, bias2d, *, seq_index, tb=512, tn=1024):
    """Fused [timestep slice + Linear] as a single Pallas TPU launch.

    input_seq: (B, S, D_in) float32
    weight_t : (D_in, Dp)   bfloat16, Dp zero-padded to a multiple of 128
    bias2d   : (1, Dp)      float32, zero-padded to Dp
    seq_index: static int -- the literal `input_seq[:, input_size]` index
    returns  : (B, Dp)      float32 (caller slices back to the true vocab size)
    """
    B, S, D_in = input_seq.shape
    D_in_w, Dp = weight_t.shape
    assert D_in == D_in_w, "weight/input feature mismatch"
    assert Dp % _LANE == 0 and bias2d.shape == (1, Dp)
    if not (0 <= seq_index < S):
        # Match PyTorch's hard failure instead of JAX's silent index clamp.
        raise ValueError(
            f"seq_len ({S}) must exceed input_size ({seq_index}) for the "
            f"literal `input_seq[:, input_size]` slice."
        )

    # ---- tile sizes: clamp to extents, shrink against the VMEM budget ----
    tb = min(tb, B)
    tn = min(tn, Dp)
    x_itemsize = input_seq.dtype.itemsize
    while _tile_footprint_bytes(tb, tn, D_in, x_itemsize) > _VMEM_BUDGET:
        if tn > _LANE and tn % (2 * _LANE) == 0:
            tn //= 2
        elif tb > 8 and tb % 16 == 0:
            tb //= 2
        else:
            break

    n_tiles_b = pl.cdiv(B, tb)
    n_tiles_n = pl.cdiv(Dp, tn)
    # Keep both TensorCores busy (v7x) even when one tile would cover it all.
    if n_tiles_b == 1 and n_tiles_n == 1 and Dp >= 2 * _LANE:
        tn = _LANE * pl.cdiv(Dp // 2, _LANE)
        n_tiles_n = pl.cdiv(Dp, tn)

    # ---- input path: fuse the timestep slice only when the per-row strided
    # DMA is wide enough (>= 128 f32 lanes); otherwise one contiguous XLA slice.
    if D_in >= _LANE:
        x_arg = input_seq
        x_spec = pl.BlockSpec((tb, None, D_in),
                              lambda j, i: (i, seq_index, 0))
    else:
        x_arg = input_seq[:, seq_index]            # contiguous (B, D_in) copy
        x_spec = pl.BlockSpec((tb, D_in), lambda j, i: (i, 0))

    # Grid: out-feature axis OUTER, batch INNER -> the weight block index is
    # constant across consecutive steps, so the dominant weight stream is only
    # DMA'd once per D_out tile (the tiny activation tile is re-streamed).
    grid = (n_tiles_n, n_tiles_b)

    footprint = _tile_footprint_bytes(tb, tn, D_in, x_itemsize)
    vmem_limit = int(min(56 << 20, max(footprint + (4 << 20), 16 << 20)))

    cost = pl.CostEstimate(
        flops=2 * B * D_in * Dp,
        transcendentals=0,
        bytes_accessed=(B * D_in * x_itemsize + D_in * Dp * 2
                        + Dp * 4 + B * Dp * 4),
    )

    return pl.pallas_call(
        _linear_kernel,
        out_shape=jax.ShapeDtypeStruct((B, Dp), jnp.float32),
        grid=grid,
        in_specs=[
            x_spec,
            pl.BlockSpec((D_in, tn), lambda j, i: (0, j)),  # resident over i
            pl.BlockSpec((1, tn), lambda j, i: (0, j)),     # resident over i
        ],
        out_specs=pl.BlockSpec((tb, tn), lambda j, i: (i, j)),
        compiler_params=pltpu.CompilerParams(
            dimension_semantics=("parallel", "parallel"),
            vmem_limit_bytes=vmem_limit,
        ),
        cost_estimate=cost,
    )(x_arg, weight_t, bias2d)


class PosMLP:
    """JAX/Pallas port of the PyTorch PosMLP module."""

    def __init__(self, input_size, pos_vocab_size, key):
        self.input_size = input_size
        self.pos_vocab_size = pos_vocab_size
        k_w, k_b = jax.random.split(key)
        # nn.Linear-style init: uniform(-1/sqrt(fan_in), +1/sqrt(fan_in)).
        bound = 1.0 / (input_size ** 0.5)
        w = jax.random.uniform(
            k_w, (pos_vocab_size, input_size), jnp.float32, -bound, bound)
        b = jax.random.uniform(
            k_b, (pos_vocab_size,), jnp.float32, -bound, bound)
        # One-time layout work (never repeated per call): transpose to
        # (D_in, D_out), zero-pad D_out to 128 lanes (lane-dense stores,
        # MXU-aligned N), and store the weight as bf16 (halves the dominant
        # HBM stream; the kernel still accumulates in f32).
        d_out_padded = _LANE * pl.cdiv(pos_vocab_size, _LANE)
        pad = d_out_padded - pos_vocab_size
        self.d_out_padded = d_out_padded
        self.weight_t = jnp.pad(w.T, ((0, 0), (0, pad))).astype(jnp.bfloat16)
        self.bias2d = jnp.pad(b, (0, pad)).reshape(1, d_out_padded)

    def __call__(self, input_seq):
        # Entire forward (literal seq-index slice + Linear) is ONE pallas_call;
        # the padded logit columns are sliced off here so they cannot leak
        # into downstream argmax/softmax.
        logits_padded = pos_mlp_forward(
            input_seq, self.weight_t, self.bias2d, seq_index=self.input_size)
        return logits_padded[:, :self.pos_vocab_size]


if __name__ == "__main__":
    root = jax.random.PRNGKey(0)

    def check(batch, input_size, pos_vocab_size, key):
        k_in, k_mod = jax.random.split(key)
        seq_len = input_size + 8   # must exceed input_size for the literal slice
        input_seq = jax.random.normal(
            k_in, (batch, seq_len, input_size), dtype=jnp.float32)
        model = PosMLP(input_size, pos_vocab_size, k_mod)
        logits = jax.block_until_ready(model(input_seq))

        # Plain-JAX reference of the literal forward (same bf16 weight, f32 acc).
        x = input_seq[:, input_size]
        w = model.weight_t[:, :pos_vocab_size]
        b = model.bias2d[0, :pos_vocab_size]
        ref = jnp.dot(x.astype(jnp.bfloat16), w,
                      preferred_element_type=jnp.float32) + b
        assert logits.shape == (batch, pos_vocab_size)
        assert jnp.allclose(logits, ref, atol=1e-2, rtol=1e-2), float(
            jnp.max(jnp.abs(logits - ref)))

    k0, k1 = jax.random.split(root)
    # Realistic small POS head: D_in < 128 -> contiguous XLA pre-slice path,
    # D_out 47 -> padded to 128 lanes inside the module.
    check(batch=4, input_size=32, pos_vocab_size=47, key=k0)
    # D_in >= 128 -> exercises the fused in-kernel timestep-slice BlockSpec.
    check(batch=4, input_size=128, pos_vocab_size=47, key=k1)

    print("KERNEL_OK")
</pallas_src>

<mosaic_0001>
module attributes {stable_mosaic.version = 11 : i64} {
  func.func @_linear_kernel(%arg0: i32, %arg1: i32, %arg2: memref<4x32xf32, #tpu.memory_space<vmem>>, %arg3: memref<32x128xbf16, #tpu.memory_space<vmem>>, %arg4: memref<1x128xf32, #tpu.memory_space<vmem>>, %arg5: memref<4x128xf32, #tpu.memory_space<vmem>>) attributes {dimension_semantics = [#tpu.dimension_semantics<parallel>, #tpu.dimension_semantics<parallel>], iteration_bounds = array<i64: 1, 1>, scalar_prefetch = 0 : i64, scratch_operands = 0 : i64, tpu.core_type = #tpu.core_type<tc>, window_params = [{transform_indices = @transform_0, window_bounds = array<i64: 4, 32>}, {transform_indices = @transform_1, window_bounds = array<i64: 32, 128>}, {transform_indices = @transform_2, window_bounds = array<i64: 1, 128>}, {transform_indices = @transform_3, window_bounds = array<i64: 4, 128>}]} {
    %c0 = arith.constant 0 : index
    %c0_0 = arith.constant 0 : index
    %0 = vector.load %arg2[%c0, %c0_0] : memref<4x32xf32, #tpu.memory_space<vmem>>, vector<4x32xf32>
    %1 = arith.truncf %0 : vector<4x32xf32> to vector<4x32xbf16>
    %c0_1 = arith.constant 0 : index
    %c0_2 = arith.constant 0 : index
    %2 = vector.load %arg3[%c0_1, %c0_2] : memref<32x128xbf16, #tpu.memory_space<vmem>>, vector<32x128xbf16>
    %cst = arith.constant dense<0.000000e+00> : vector<4x128xf32>
    %3 = tpu.matmul %1, %2, %cst {dimension_numbers = #tpu.dot_dimension_numbers<[1], [0], [0], [1], [0, 0, 1, 1], [], []>} : vector<4x32xbf16>, vector<32x128xbf16>, vector<4x128xf32> -> vector<4x128xf32>
    %c0_3 = arith.constant 0 : index
    %c0_4 = arith.constant 0 : index
    %4 = vector.load %arg4[%c0_3, %c0_4] : memref<1x128xf32, #tpu.memory_space<vmem>>, vector<1x128xf32>
    %5 = vector.broadcast %4 : vector<1x128xf32> to vector<4x128xf32>
    %6 = arith.addf %3, %5 : vector<4x128xf32>
    %c0_5 = arith.constant 0 : index
    %c0_6 = arith.constant 0 : index
    %7 = vector.load %arg5[%c0_5, %c0_6] : memref<4x128xf32, #tpu.memory_space<vmem>>, vector<4x128xf32>
    tpu.vector_store %arg5[%c0_5, %c0_6], %6 {strides = array<i32>} : memref<4x128xf32, #tpu.memory_space<vmem>>, vector<4x128xf32>,
    return
  }
  func.func @transform_0(%arg0: i32, %arg1: i32) -> (i32, i32) {
    %c0_i32 = arith.constant 0 : i32
    %c0_i32_0 = arith.constant 0 : i32
    return %arg1, %c0_i32 : i32, i32
  }
  func.func @transform_1(%arg0: i32, %arg1: i32) -> (i32, i32) {
    %c0_i32 = arith.constant 0 : i32
    %c0_i32_0 = arith.constant 0 : i32
    return %c0_i32, %arg0 : i32, i32
  }
  func.func @transform_2(%arg0: i32, %arg1: i32) -> (i32, i32) {
    %c0_i32 = arith.constant 0 : i32
    %c0_i32_0 = arith.constant 0 : i32
    return %c0_i32, %arg0 : i32, i32
  }
  func.func @transform_3(%arg0: i32, %arg1: i32) -> (i32, i32) {
    %c0_i32 = arith.constant 0 : i32
    return %arg1, %arg0 : i32, i32
  }
}

</mosaic_0001>

<llo_original>
// kernel: tpu_custom_call.1
$region0: #{tpu_custom_call.1}
  #allocation0 [shape = 'u32[]', space=smem, size = 0x4, offset = 0x4, fixed_abs, tag = 'smem constant byte address 0x4 - core index']
  #allocation1 [shape = 'u32[144,128]{1,0:T(1,128)}', space=vmem, size = 0x12000, scoped, tag = 'internal scratch']
  %s0 = inlined_call_operand.hbm [shape: f32[4,32], index: 0, kind: input, shape index: {}]
  %s1 = inlined_call_operand.hbm [shape: bf16[32,128], index: 1, kind: input, shape index: {}]
  %s2 = inlined_call_operand.vmem [shape: f32[1,128], index: 2, kind: input, shape index: {}]
  %s3 = inlined_call_operand.hbm [shape: f32[4,128], index: 3, kind: output, shape index: {}]
  %s4 = sld [smem:[#allocation0]]
  $region30: #{tpu_custom_call.1} parent=0
    _
  %s6 = ssub.s32 1, %s4
  %s7 = scalar_select 0, %s6, %s4
  $region1: #{tpu_custom_call.1} parent=0
    #allocation2 [shape = 'u8[2048]{0}', space=vmem, size = 0x800, scoped, tag = 'input window, operand 0, single buffered']
    #allocation3 [shape = 's32[1]{0}', space=sflag, size = 0x4, scoped, tag = 'scoped memory for tpu_custom_call.1']
    #allocation4 [shape = 's32[1]{0}', space=sflag, size = 0x4, scoped, tag = 'scoped memory for tpu_custom_call.1']
    #allocation5 [shape = 'u8[8192]{0}', space=vmem, size = 0x2000, scoped, tag = 'input window, operand 1, single buffered']
    #allocation6 [shape = 's32[1]{0}', space=sflag, size = 0x4, scoped, tag = 'scoped memory for tpu_custom_call.1']
    #allocation7 [shape = 'u8[2048]{0}', space=vmem, size = 0x800, scoped, tag = 'output window, operand 0, single buffered']
    %8 = vsyncpa [#allocation3], 0
    %9 = vsyncpa [#allocation6], 0
    %10 = vsyncpa [#allocation4], 0
    // Predicated region
    $region2: #{tpu_custom_call.1} parent=1 // pred_check
      _
    $region3: #{tpu_custom_call.1} parent=1 // pred_check_branch
      %12 = sbr.rel (0) target = $region5
    $region4: #{tpu_custom_call.1} parent=1 // pred_region
      %s14 = ssub.s32 64, 64
      %15 = vsyncadd [#allocation3], %s14
      %s17 = sshll.u32 [#allocation2], 4
      %s18 = int_to_ptr.vmem [resolvable:$true] %s17
      %20 = dma.hbm_to_vmem [thread:$0]  %s0, 64, %s18, [#allocation3]
    $region5: #{tpu_custom_call.1} parent=1 // pred_fallthru
      _
    // Predicated region
    $region6: #{tpu_custom_call.1} parent=1 // pred_check
      _
    $region7: #{tpu_custom_call.1} parent=1 // pred_check_branch
      %22 = sbr.rel (0) target = $region9
    $region8: #{tpu_custom_call.1} parent=1 // pred_region
      %s24 = ssub.s32 256, 256
      %25 = vsyncadd [#allocation6], %s24
      %s26 = sshll.u32 [#allocation5], 4
      %s27 = int_to_ptr.vmem [resolvable:$true] %s26
      %32 = dma.hbm_to_vmem [thread:$0]  %s1, 256, %s27, [#allocation6], 64, 64, 4
    $region9: #{tpu_custom_call.1} parent=1 // pred_fallthru
      _
    // Predicated region
    $region10: #{tpu_custom_call.1} parent=1 // pred_check
      _
    $region11: #{tpu_custom_call.1} parent=1 // pred_check_branch
      %34 = sbr.rel (0) target = $region13
    $region12: #{tpu_custom_call.1} parent=1 // pred_region
      _
    $region13: #{tpu_custom_call.1} parent=1 // pred_fallthru
      _
    // Predicated region
    $region14: #{tpu_custom_call.1} parent=1 // pred_check
      _
    $region15: #{tpu_custom_call.1} parent=1 // pred_check_branch
      %36 = sbr.rel (0) target = $region17
    $region16: #{tpu_custom_call.1} parent=1 // pred_region
      %37 = dma.done [#allocation3], 64
    $region17: #{tpu_custom_call.1} parent=1 // pred_fallthru
      _
    // Predicated region
    $region18: #{tpu_custom_call.1} parent=1 // pred_check
      _
    $region19: #{tpu_custom_call.1} parent=1 // pred_check_branch
      %39 = sbr.rel (0) target = $region21
    $region20: #{tpu_custom_call.1} parent=1 // pred_region
      %40 = dma.done [#allocation6], 256
    $region21: #{tpu_custom_call.1} parent=1 // pred_fallthru
      _
    %v42 = vld [vmem:[#allocation2] sm:$0xf]
    %v43 = vpack.c.bf16 %v42, %v42
    %v44 = vld [vmem:[#allocation5] sm:$0xf]
    %v45 = vld [vmem:[#allocation5 + $0x4] sm:$0xf]
    %v46 = vld [vmem:[#allocation5 + $0x8] sm:$0xf]
    %v47 = vld [vmem:[#allocation5 + $0xc] sm:$0xf]
    %v48 = vld [vmem:[%s2] sm:$0x1]
    %v50 = vlaneseq
    %v51 = vshrl.u32 %v50, 7
    %v52 = vsub.s32 0, %v51
    %v53 = vrot.slane %v48, %v52
    %v59 = vunpack.c.l.b16 %v44
    %v60 = vunpack.c.l.b16 %v45
    %v61 = vunpack.c.l.b16 %v46
    %v62 = vunpack.c.l.b16 %v47
    %v63 = vpack.c.b16 %v60, %v59
    %v64 = vpack.c.b16 %v62, %v61
    %vm67 = vcmask 261120
    %v69 = vsel %vm67, %v43, 0
    %71 = vmatprep.subr.bf16.mxu0 0
    %72 = vmatpush1.bf16.msra.mxu0 %v63
    %73 = vmatprep.subr.bf16.mxu0 0
    %74 = vmatpush1.bf16.msra.mxu0 %v64
    %75 = vmatprep.subr.bf16.mxu0 0
    %76 = vmatpush1.bf16.msra.mxu0 0
    %77 = vmatprep.subr.bf16.mxu0 0
    %78 = vmatpush1.bf16.msra.mxu0 0
    %79 = vmatprep.subr.bf16.mxu0 0
    %80 = vmatpush1.bf16.msra.mxu0 0
    %81 = vmatprep.subr.bf16.mxu0 0
    %82 = vmatpush1.bf16.msra.mxu0 0
    %83 = vmatprep.subr.bf16.mxu0 0
    %84 = vmatpush1.bf16.msra.mxu0 0
    %85 = vmatprep.subr.bf16.mxu0 0
    %86 = vmatpush1.bf16.msra.mxu0 0
    %87 = vmatprep.subr.bf16.mxu0 0
    %88 = vmatpush1.bf16.msra.mxu0 0
    %89 = vmatprep.subr.bf16.mxu0 0
    %90 = vmatpush1.bf16.msra.mxu0 0
    %91 = vmatprep.subr.bf16.mxu0 0
    %92 = vmatpush1.bf16.msra.mxu0 0
    %93 = vmatprep.subr.bf16.mxu0 0
    %94 = vmatpush1.bf16.msra.mxu0 0
    %95 = vmatprep.subr.bf16.mxu0 0
    %96 = vmatpush1.bf16.msra.mxu0 0
    %97 = vmatprep.subr.bf16.mxu0 0
    %98 = vmatpush1.bf16.msra.mxu0 0
    %99 = vmatprep.subr.bf16.mxu0 0
    %100 = vmatpush1.bf16.msra.mxu0 0
    %101 = vmatprep.subr.bf16.mxu0 0
    %102 = vmatpush1.bf16.msra.mxu0 0
    %103 = vmatprep.mubr.bf16.mxu0 0
    %104 = vmatmul.mubr.bf16.gmra.mrb[0].mxu0 %v69
    %v105 = vpop.f32.mrb[0].mxu0
    %v106 = vadd.f32 %v53, %v105
    %v107 = vpop.f32.mrb[0].mxu0
    %v108 = vpop.f32.mrb[0].mxu0
    %v109 = vpop.f32.mrb[0].mxu0
    %110 = vdwg.mxu0
    %111 = vst [vmem:[#allocation7] sm:$0xf] %v106
    // Predicated region
    $region22: #{tpu_custom_call.1} parent=1 // pred_check
      _
    $region23: #{tpu_custom_call.1} parent=1 // pred_check_branch
      %113 = sbr.rel (0) target = $region25
    $region24: #{tpu_custom_call.1} parent=1 // pred_region
      %s115 = ssub.s32 64, 64
      %116 = vsyncadd [#allocation4], %s115
      %s118 = sshll.u32 [#allocation7], 4
      %s119 = int_to_ptr.vmem [resolvable:$true] %s118
      %121 = dma.vmem_to_hbm [thread:$0]  %s119, 64, %s3, [#allocation4]
    $region25: #{tpu_custom_call.1} parent=1 // pred_fallthru
      _
    // Predicated region
    $region26: #{tpu_custom_call.1} parent=1 // pred_check
      _
    $region27: #{tpu_custom_call.1} parent=1 // pred_check_branch
      %123 = sbr.rel (0) target = $region29
    $region28: #{tpu_custom_call.1} parent=1 // pred_region
      %124 = dma.done [#allocation4], 64
    $region29: #{tpu_custom_call.1} parent=1 // pred_fallthru
      _
    %125 = vsyncpa [#allocation3], 1
    %126 = vsyncpa [#allocation6], 1
    %127 = vsyncpa [#allocation4], 1

</llo_original>
